<compile_context>
chip_gen: v5e
topology: v5e:2x2
jax: 0.10.0
libtpu: 0.0.40
codegen_flags: <defaults>
</compile_context>

<pallas_src>
import jax
import jax.numpy as jnp
from jax.experimental import pallas as pl
from jax.experimental.pallas import tpu as pltpu


# ---------------------------------------------------------------------------
# Kernel: pure lane-dense identity copy of one (TN, F) VMEM tile.
# ---------------------------------------------------------------------------
def _copy_kernel(x_ref, o_ref):
    o_ref[...] = x_ref[...]


# Per-block VMEM budget.  Input + output each double-buffered => ~4x this
# resident (~8 MiB): fits under default scoped VMEM on v5e (16 MiB),
# v6e (32 MiB) and v7x (32 MiB default of 64 MiB physical), while still
# giving >= 1 MiB tiles (~85% of HBM roofline for a pure copy).
_BLOCK_BUDGET_BYTES = 2 * 1024 * 1024
# Explicit scoped-VMEM limit: below physical on every generation, leaves
# headroom for Pallas internal scratch on top of the pipeline buffers.
_VMEM_LIMIT_BYTES = 32 * 1024 * 1024


def _largest_divisor(x, cap, multiple_of=1):
    """Largest divisor of x that is <= cap and a multiple of `multiple_of`.
    Returns 0 if none exists."""
    cap = min(cap, x)
    best = 0
    d = 1
    while d * d <= x:
        if x % d == 0:
            for cand in (d, x // d):
                if cand <= cap and cand % multiple_of == 0 and cand > best:
                    best = cand
        d += 1
    return best


def _min_grid_steps(total_bytes):
    # Force a few grid steps on anything non-trivial so input DMA, the VMEM
    # copy and output DMA overlap, and both v7x TensorCores get work.
    if total_bytes >= 8 * 1024 * 1024:
        return 4
    if total_bytes >= 1 * 1024 * 1024:
        return 2
    return 1


def _pick_slab(total, itemsize):
    """Pick a lane/sublane-aligned slab (R, F) with R*F == total plus a row
    tile TN, so the block (TN, F) is (sublane, 128)-aligned, fits the VMEM
    budget and gives several pipelined grid steps.
    Returns (R, F, TN) or None if total is not a multiple of 128."""
    if total % 128 != 0:
        return None
    sublane = max(8, 32 // itemsize)  # 8 f32 / 16 bf16 / 32 int8

    # Widest lane count (multiple of 128 dividing total, capped so one row
    # never busts the block budget) such that R = total // F stays a multiple
    # of the sublane count.
    max_f = min(total, 4096)
    f = 0
    for cand in range(max_f - max_f % 128, 127, -128):
        if total % (cand * sublane) == 0:
            f = cand
            break
    if f == 0:
        # No sublane-friendly width: take any multiple-of-128 width; the row
        # tile then falls back to TN == R (full dim is always a legal block).
        for cand in range(max_f - max_f % 128, 127, -128):
            if total % cand == 0:
                f = cand
                break
    if f == 0:
        return None
    r = total // f

    total_bytes = total * itemsize
    row_bytes = f * itemsize
    max_tn = max(1, _BLOCK_BUDGET_BYTES // row_bytes)
    cap = min(max_tn, max(1, r // _min_grid_steps(total_bytes)))

    tn = 0
    if r % sublane == 0 and cap >= sublane:
        tn = _largest_divisor(r, cap, multiple_of=sublane)
    if tn == 0:
        tn = r if r <= max_tn else max(1, _largest_divisor(r, cap))
    return r, f, tn


def _pick_fallback_row_tile(n, flat, itemsize):
    """total not a multiple of 128: tile the logical (N, F) shape with the
    flat axis kept whole (block last dim == full dim is always legal)."""
    sublane = max(8, 32 // itemsize)
    row_bytes = max(1, flat * itemsize)
    max_tn = max(1, _BLOCK_BUDGET_BYTES // row_bytes)
    tn = _largest_divisor(n, max_tn, multiple_of=sublane)
    if tn == 0:
        if n * row_bytes <= 4 * _BLOCK_BUDGET_BYTES:
            tn = n  # full dim: always a legal second-minor block size
        else:
            tn = max(1, _largest_divisor(n, max_tn))
    return tn


def flatten(x):
    """Flatten all non-batch dims: (N, ...) -> (N, prod(...)), matching
    torch's x.view(x.size(0), -1) on a contiguous tensor."""
    n = x.shape[0]
    flat = 1
    for d in x.shape[1:]:
        flat *= d
    total = n * flat
    itemsize = jnp.dtype(x.dtype).itemsize

    slab = _pick_slab(total, itemsize)
    if slab is not None:
        r, f, tn = slab
    else:
        r, f = n, flat
        tn = _pick_fallback_row_tile(n, flat, itemsize)

    # Free metadata reshape to the DMA-friendly slab (contiguous memory).
    x2 = jnp.reshape(x, (r, f))
    grid = (r // tn,)

    out = pl.pallas_call(
        _copy_kernel,
        out_shape=jax.ShapeDtypeStruct((r, f), x.dtype),
        grid=grid,
        in_specs=[pl.BlockSpec((tn, f), lambda i: (i, 0))],
        out_specs=pl.BlockSpec((tn, f), lambda i: (i, 0)),
        compiler_params=pltpu.CompilerParams(
            dimension_semantics=("parallel",),
            vmem_limit_bytes=_VMEM_LIMIT_BYTES,
        ),
        cost_estimate=pl.CostEstimate(
            flops=0,
            transcendentals=0,
            bytes_accessed=2 * total * itemsize,
        ),
    )(x2)

    # Free metadata reshape back to the logical (N, prod(rest)) shape.
    return jnp.reshape(out, (n, flat))


if __name__ == "__main__":
    key = jax.random.PRNGKey(0)
    # Small NCHW input consistent with a conv-feature-map flatten.
    x = jax.random.normal(key, (2, 4, 16, 16), dtype=jnp.float32)

    # Reference: plain JAX reshape (same semantics as torch .view(N, -1)).
    ref = x.reshape(x.shape[0], -1)

    out = flatten(x)
    out = jax.block_until_ready(out)

    assert out.shape == (2, 4 * 16 * 16), out.shape
    assert out.dtype == x.dtype
    assert bool(jnp.array_equal(out, ref))

    print("KERNEL_OK")
</pallas_src>

<mosaic_0001>
module attributes {stable_mosaic.version = 11 : i64} {
  func.func @_copy_kernel(%arg0: i32, %arg1: memref<8x256xf32, #tpu.memory_space<vmem>>, %arg2: memref<8x256xf32, #tpu.memory_space<vmem>>) attributes {dimension_semantics = [#tpu.dimension_semantics<parallel>], iteration_bounds = array<i64: 1>, scalar_prefetch = 0 : i64, scratch_operands = 0 : i64, tpu.core_type = #tpu.core_type<tc>, window_params = [{transform_indices = @transform_0, window_bounds = array<i64: 8, 256>}, {transform_indices = @transform_1, window_bounds = array<i64: 8, 256>}]} {
    %c0 = arith.constant 0 : index
    %c0_0 = arith.constant 0 : index
    %0 = vector.load %arg1[%c0, %c0_0] : memref<8x256xf32, #tpu.memory_space<vmem>>, vector<8x256xf32>
    %c0_1 = arith.constant 0 : index
    %c0_2 = arith.constant 0 : index
    %1 = vector.load %arg2[%c0_1, %c0_2] : memref<8x256xf32, #tpu.memory_space<vmem>>, vector<8x256xf32>
    tpu.vector_store %arg2[%c0_1, %c0_2], %0 {strides = array<i32>} : memref<8x256xf32, #tpu.memory_space<vmem>>, vector<8x256xf32>,
    return
  }
  func.func @transform_0(%arg0: i32) -> (i32, i32) {
    %c0_i32 = arith.constant 0 : i32
    %c0_i32_0 = arith.constant 0 : i32
    return %arg0, %c0_i32 : i32, i32
  }
  func.func @transform_1(%arg0: i32) -> (i32, i32) {
    %c0_i32 = arith.constant 0 : i32
    %c0_i32_0 = arith.constant 0 : i32
    return %arg0, %c0_i32 : i32, i32
  }
}

</mosaic_0001>

<llo_original>
// kernel: tpu_custom_call.1
$region0: #{tpu_custom_call.1}
  #allocation0 [shape = 'u32[]', space=smem, size = 0x4, offset = 0x4, fixed_abs, tag = 'smem constant byte address 0x4 - core index']
  #allocation1 [shape = 'u32[72,128]{1,0:T(1,128)}', space=vmem, size = 0x9000, scoped, tag = 'internal scratch']
  %s0 = inlined_call_operand.hbm [shape: f32[8,256], index: 0, kind: input, shape index: {}]
  %s1 = inlined_call_operand.hbm [shape: f32[8,256], index: 1, kind: output, shape index: {}]
  %s2 = sld [smem:[#allocation0]]
  $region18: #{tpu_custom_call.1} parent=0
    _
  %s4 = ssub.s32 1, %s2
  %s5 = scalar_select 0, %s4, %s2
  $region1: #{tpu_custom_call.1} parent=0
    #allocation2 [shape = 'u8[8192]{0}', space=vmem, size = 0x2000, scoped, tag = 'input window, operand 0, single buffered']
    #allocation3 [shape = 's32[1]{0}', space=sflag, size = 0x4, scoped, tag = 'scoped memory for tpu_custom_call.1']
    #allocation4 [shape = 's32[1]{0}', space=sflag, size = 0x4, scoped, tag = 'scoped memory for tpu_custom_call.1']
    #allocation5 [shape = 'u8[8192]{0}', space=vmem, size = 0x2000, scoped, tag = 'output window, operand 0, single buffered']
    %6 = vsyncpa [#allocation3], 0
    %7 = vsyncpa [#allocation4], 0
    // Predicated region
    $region2: #{tpu_custom_call.1} parent=1 // pred_check
      _
    $region3: #{tpu_custom_call.1} parent=1 // pred_check_branch
      %9 = sbr.rel (0) target = $region5
    $region4: #{tpu_custom_call.1} parent=1 // pred_region
      %11 = vsyncadd [#allocation3], 0
      %s13 = sshll.u32 %s0, 4
      %s14 = int_to_ptr.hbm [resolvable:$true] %s13
      %s15 = sshll.u32 [#allocation2], 4
      %s16 = int_to_ptr.vmem [resolvable:$true] %s15
      %18 = dma.hbm_to_vmem [thread:$0]  %s14, 256, %s16, [#allocation3]
    $region5: #{tpu_custom_call.1} parent=1 // pred_fallthru
      _
    // Predicated region
    $region6: #{tpu_custom_call.1} parent=1 // pred_check
      _
    $region7: #{tpu_custom_call.1} parent=1 // pred_check_branch
      %20 = sbr.rel (0) target = $region9
    $region8: #{tpu_custom_call.1} parent=1 // pred_region
      %22 = dma.done [#allocation3], 256
    $region9: #{tpu_custom_call.1} parent=1 // pred_fallthru
      _
    %v23 = vld [vmem:[#allocation2] sm:$0xff]
    %v24 = vld [vmem:[#allocation2 + $0x8] sm:$0xff]
    %25 = vst [vmem:[#allocation5] sm:$0xff] %v23
    %26 = vst [vmem:[#allocation5 + $0x8] sm:$0xff] %v24
    // Predicated region
    $region10: #{tpu_custom_call.1} parent=1 // pred_check
      _
    $region11: #{tpu_custom_call.1} parent=1 // pred_check_branch
      %28 = sbr.rel (0) target = $region13
    $region12: #{tpu_custom_call.1} parent=1 // pred_region
      %30 = vsyncadd [#allocation4], 0
      %s32 = sshll.u32 [#allocation5], 4
      %s33 = int_to_ptr.vmem [resolvable:$true] %s32
      %s34 = sshll.u32 %s1, 4
      %s35 = int_to_ptr.hbm [resolvable:$true] %s34
      %37 = dma.vmem_to_hbm [thread:$0]  %s33, 256, %s35, [#allocation4]
    $region13: #{tpu_custom_call.1} parent=1 // pred_fallthru
      _
    // Predicated region
    $region14: #{tpu_custom_call.1} parent=1 // pred_check
      _
    $region15: #{tpu_custom_call.1} parent=1 // pred_check_branch
      %39 = sbr.rel (0) target = $region17
    $region16: #{tpu_custom_call.1} parent=1 // pred_region
      %41 = dma.done [#allocation4], 256
    $region17: #{tpu_custom_call.1} parent=1 // pred_fallthru
      _
    %42 = vsyncpa [#allocation3], 1
    %43 = vsyncpa [#allocation4], 1

</llo_original>
